<compile_context>
chip_gen: v5e
topology: v5e:2x2
jax: 0.10.0
libtpu: 0.0.40
codegen_flags: <defaults>
</compile_context>

<pallas_src>
import jax
import jax.numpy as jnp
from jax.experimental import pallas as pl
from jax.experimental.pallas import tpu as pltpu

LEAKY_SLOPE = 0.01
BN_EPS = 1e-5
B_INST = 8  # batch size of one independent forward pass (one BN batch)

# ---- packed parameter slab layout: (80, 128) float32, one DMA -------------
ROW_B1, ROW_G1, ROW_BE1 = 0, 1, 2       # 64 lanes each
ROW_B2, ROW_G2, ROW_BE2 = 3, 4, 5       # 32 lanes each
ROW_B3 = 6                              # 2 lanes
ROW_W3C0, ROW_W3C1 = 7, 8               # w3[:, 0], w3[:, 1] -> 32 lanes each
ROW_W1 = 9                              # rows 9..12 = the 4 rows of w1 (4, 64)
ROW_W2 = 16                             # rows 16..79, lanes 0:32 = w2 (64, 32)
SLAB_ROWS, SLAB_LANES = 80, 128


def _leaky_relu(x):
    # vmul + vmax instead of compare + select (slope < 1 so this is exact).
    return jnp.maximum(x, LEAKY_SLOPE * x)


def _batchnorm_train(h, gamma, beta, inv_n):
    # Training-mode BatchNorm1d: biased batch variance, eps=1e-5.
    # Fused reductions: sum and sum-of-squares back-to-back, var = E[h^2]-mu^2.
    s = jnp.sum(h, axis=0, keepdims=True)
    ss = jnp.sum(h * h, axis=0, keepdims=True)
    mu = s * inv_n
    var = ss * inv_n - mu * mu
    scale = jax.lax.rsqrt(var + BN_EPS) * gamma
    return (h - mu) * scale + beta


def mlp_kernel(x_ref, slab_ref, o_ref):
    x = x_ref[...]                       # (B_INST, 4)
    sp = slab_ref[0:16, :]               # small per-channel params (2 vregs)
    inv_n = 1.0 / x.shape[0]

    # ---- Layer 1: Linear(4 -> 64) as 4 VPU broadcast FMAs (K=4 would waste
    # the MXU and pay result-FIFO pop latency), then LeakyReLU + BatchNorm.
    h = x[:, 0:1] * sp[ROW_W1 + 0:ROW_W1 + 1, 0:64]
    h = h + x[:, 1:2] * sp[ROW_W1 + 1:ROW_W1 + 2, 0:64]
    h = h + x[:, 2:3] * sp[ROW_W1 + 2:ROW_W1 + 3, 0:64]
    h = h + x[:, 3:4] * sp[ROW_W1 + 3:ROW_W1 + 4, 0:64]
    h = h + sp[ROW_B1:ROW_B1 + 1, 0:64]
    h = _leaky_relu(h)
    h = _batchnorm_train(h, sp[ROW_G1:ROW_G1 + 1, 0:64],
                         sp[ROW_BE1:ROW_BE1 + 1, 0:64], inv_n)

    # ---- Layer 2: Linear(64 -> 32) on the MXU.  w2 lives inside the slab
    # (sublane-aligned static slice; unused lanes are zero).
    h = jnp.dot(h, slab_ref[ROW_W2:ROW_W2 + 64, 0:32],
                preferred_element_type=jnp.float32)
    h = h + sp[ROW_B2:ROW_B2 + 1, 0:32]
    h = _leaky_relu(h)
    h = _batchnorm_train(h, sp[ROW_G2:ROW_G2 + 1, 0:32],
                         sp[ROW_BE2:ROW_BE2 + 1, 0:32], inv_n)

    # ---- Layer 3: Linear(32 -> 2) as two per-lane dots (N=2 off the MXU),
    # stored column-by-column -> no lane concatenate on the critical tail.
    o0 = jnp.sum(h * sp[ROW_W3C0:ROW_W3C0 + 1, 0:32], axis=-1, keepdims=True)
    o1 = jnp.sum(h * sp[ROW_W3C1:ROW_W3C1 + 1, 0:32], axis=-1, keepdims=True)
    o_ref[:, 0:1] = (o0 + sp[ROW_B3:ROW_B3 + 1, 0:1]).astype(o_ref.dtype)
    o_ref[:, 1:2] = (o1 + sp[ROW_B3:ROW_B3 + 1, 1:2]).astype(o_ref.dtype)


def pack_params(params):
    """Pack every parameter (including w2) into one lane-dense (80,128) slab.

    One DMA descriptor for all parameters; do this once, outside the hot path.
    """
    slab = jnp.zeros((SLAB_ROWS, SLAB_LANES), jnp.float32)
    slab = slab.at[ROW_B1, 0:64].set(params["b1"].reshape(64))
    slab = slab.at[ROW_G1, 0:64].set(params["g1"].reshape(64))
    slab = slab.at[ROW_BE1, 0:64].set(params["be1"].reshape(64))
    slab = slab.at[ROW_B2, 0:32].set(params["b2"].reshape(32))
    slab = slab.at[ROW_G2, 0:32].set(params["g2"].reshape(32))
    slab = slab.at[ROW_BE2, 0:32].set(params["be2"].reshape(32))
    slab = slab.at[ROW_B3, 0:2].set(params["b3"].reshape(2))
    slab = slab.at[ROW_W3C0, 0:32].set(params["w3"][:, 0])
    slab = slab.at[ROW_W3C1, 0:32].set(params["w3"][:, 1])
    slab = slab.at[ROW_W1:ROW_W1 + 4, 0:64].set(params["w1"])
    slab = slab.at[ROW_W2:ROW_W2 + 64, 0:32].set(params["w2"])
    return slab


def network_forward(x, slab, *, batch_per_instance=B_INST):
    """x: (N*batch_per_instance, 4) f32, slab: (80,128) packed params.

    Each consecutive `batch_per_instance` rows is an *independent* forward
    pass / BatchNorm batch; all instances share one pallas_call so the
    parameter slab is DMA'd once and stays VMEM-resident across grid steps.
    """
    total = x.shape[0]
    assert total % batch_per_instance == 0
    n_inst = total // batch_per_instance
    flops = 2 * total * (4 * 64 + 64 * 32 + 32 * 2)
    bytes_accessed = 4 * (x.size + slab.size + total * 2)
    return pl.pallas_call(
        mlp_kernel,
        out_shape=jax.ShapeDtypeStruct((total, 2), jnp.float32),
        grid=(n_inst,),
        in_specs=[
            pl.BlockSpec((batch_per_instance, 4), lambda i: (i, 0)),
            # Constant index_map -> parameters fetched once, VMEM-resident.
            pl.BlockSpec((SLAB_ROWS, SLAB_LANES), lambda i: (0, 0)),
        ],
        out_specs=pl.BlockSpec((batch_per_instance, 2), lambda i: (i, 0)),
        compiler_params=pltpu.CompilerParams(
            dimension_semantics=("parallel",)),  # 2x on v7x's two TCs
        cost_estimate=pl.CostEstimate(
            flops=flops, transcendentals=n_inst * (64 + 32),
            bytes_accessed=bytes_accessed),
    )(x, slab)


def init_params(key):
    """Deterministic synthetic init matching the PyTorch module's shapes."""
    ks = jax.random.split(key, 6)

    def linear(kw, kb, fan_in, fan_out):
        bound = 1.0 / jnp.sqrt(fan_in)
        # Stored as (in, out) == transpose of PyTorch's (out, in).
        w = jax.random.uniform(kw, (fan_in, fan_out), jnp.float32, -bound, bound)
        b = jax.random.uniform(kb, (1, fan_out), jnp.float32, -bound, bound)
        return w, b

    w1, b1 = linear(ks[0], ks[1], 4, 64)
    w2, b2 = linear(ks[2], ks[3], 64, 32)
    w3, b3 = linear(ks[4], ks[5], 32, 2)

    return dict(
        w1=w1, b1=b1, g1=jnp.ones((1, 64), jnp.float32), be1=jnp.zeros((1, 64), jnp.float32),
        w2=w2, b2=b2, g2=jnp.ones((1, 32), jnp.float32), be2=jnp.zeros((1, 32), jnp.float32),
        w3=w3, b3=b3,
    )


def _reference_forward(x, p):
    """Plain-JAX reference with PyTorch train-mode BN semantics (one batch)."""
    def bn(h, g, b):
        mu = jnp.mean(h, axis=0, keepdims=True)
        var = jnp.mean((h - mu) * (h - mu), axis=0, keepdims=True)
        return (h - mu) * jax.lax.rsqrt(var + BN_EPS) * g + b

    def lrelu(h):
        return jnp.where(h > 0, h, LEAKY_SLOPE * h)

    h = x @ p["w1"] + p["b1"]
    h = bn(lrelu(h), p["g1"], p["be1"])
    h = h @ p["w2"] + p["b2"]
    h = bn(lrelu(h), p["g2"], p["be2"])
    return h @ p["w3"] + p["b3"]


# TODO(synk): PyTorch training-mode BatchNorm1d also updates running_mean /
# running_var buffers; this pure forward kernel does not consume or emit them.

if __name__ == "__main__":
    key = jax.random.PRNGKey(0)
    k_x, k_p = jax.random.split(key)

    N_INST = 4                 # independent B=8 forward passes in one call
    x = jax.random.normal(k_x, (N_INST * B_INST, 4), jnp.float32)
    params = init_params(k_p)
    slab = pack_params(params)

    out = network_forward(x, slab, batch_per_instance=B_INST)
    out = jax.block_until_ready(out)

    ref = jnp.concatenate(
        [_reference_forward(x[i * B_INST:(i + 1) * B_INST], params)
         for i in range(N_INST)], axis=0)
    assert out.shape == (N_INST * B_INST, 2)
    assert jnp.allclose(out, ref, atol=1e-4, rtol=1e-4), "Pallas output mismatch vs reference"

    print("KERNEL_OK")
</pallas_src>

<mosaic_0001>
module attributes {stable_mosaic.version = 11 : i64} {
  func.func @mlp_kernel(%arg0: i32, %arg1: memref<8x4xf32, #tpu.memory_space<vmem>>, %arg2: memref<80x128xf32, #tpu.memory_space<vmem>>, %arg3: memref<8x2xf32, #tpu.memory_space<vmem>>) attributes {dimension_semantics = [#tpu.dimension_semantics<parallel>], iteration_bounds = array<i64: 4>, scalar_prefetch = 0 : i64, scratch_operands = 0 : i64, tpu.core_type = #tpu.core_type<tc>, window_params = [{transform_indices = @transform_0, window_bounds = array<i64: 8, 4>}, {pipeline_mode = #tpu.pipeline_mode<synchronous>, transform_indices = @transform_1, window_bounds = array<i64: 80, 128>}, {transform_indices = @transform_2, window_bounds = array<i64: 8, 2>}]} {
    %c0 = arith.constant 0 : index
    %c0_0 = arith.constant 0 : index
    %0 = vector.load %arg1[%c0, %c0_0] : memref<8x4xf32, #tpu.memory_space<vmem>>, vector<8x4xf32>
    %c0_1 = arith.constant 0 : index
    %c0_2 = arith.constant 0 : index
    %1 = vector.load %arg2[%c0_1, %c0_2] : memref<80x128xf32, #tpu.memory_space<vmem>>, vector<16x128xf32>
    %2 = vector.extract_strided_slice %0 {offsets = [0, 0], sizes = [8, 1], strides = [1, 1]} : vector<8x4xf32> to vector<8x1xf32>
    %3 = vector.extract_strided_slice %1 {offsets = [9, 0], sizes = [1, 64], strides = [1, 1]} : vector<16x128xf32> to vector<1x64xf32>
    %4 = vector.broadcast %2 : vector<8x1xf32> to vector<8x64xf32>
    %5 = vector.broadcast %3 : vector<1x64xf32> to vector<8x64xf32>
    %6 = arith.mulf %4, %5 : vector<8x64xf32>
    %7 = vector.extract_strided_slice %0 {offsets = [0, 1], sizes = [8, 1], strides = [1, 1]} : vector<8x4xf32> to vector<8x1xf32>
    %8 = vector.extract_strided_slice %1 {offsets = [10, 0], sizes = [1, 64], strides = [1, 1]} : vector<16x128xf32> to vector<1x64xf32>
    %9 = vector.broadcast %7 : vector<8x1xf32> to vector<8x64xf32>
    %10 = vector.broadcast %8 : vector<1x64xf32> to vector<8x64xf32>
    %11 = arith.mulf %9, %10 : vector<8x64xf32>
    %12 = arith.addf %6, %11 : vector<8x64xf32>
    %13 = vector.extract_strided_slice %0 {offsets = [0, 2], sizes = [8, 1], strides = [1, 1]} : vector<8x4xf32> to vector<8x1xf32>
    %14 = vector.extract_strided_slice %1 {offsets = [11, 0], sizes = [1, 64], strides = [1, 1]} : vector<16x128xf32> to vector<1x64xf32>
    %15 = vector.broadcast %13 : vector<8x1xf32> to vector<8x64xf32>
    %16 = vector.broadcast %14 : vector<1x64xf32> to vector<8x64xf32>
    %17 = arith.mulf %15, %16 : vector<8x64xf32>
    %18 = arith.addf %12, %17 : vector<8x64xf32>
    %19 = vector.extract_strided_slice %0 {offsets = [0, 3], sizes = [8, 1], strides = [1, 1]} : vector<8x4xf32> to vector<8x1xf32>
    %20 = vector.extract_strided_slice %1 {offsets = [12, 0], sizes = [1, 64], strides = [1, 1]} : vector<16x128xf32> to vector<1x64xf32>
    %21 = vector.broadcast %19 : vector<8x1xf32> to vector<8x64xf32>
    %22 = vector.broadcast %20 : vector<1x64xf32> to vector<8x64xf32>
    %23 = arith.mulf %21, %22 : vector<8x64xf32>
    %24 = arith.addf %18, %23 : vector<8x64xf32>
    %25 = vector.extract_strided_slice %1 {offsets = [0, 0], sizes = [1, 64], strides = [1, 1]} : vector<16x128xf32> to vector<1x64xf32>
    %26 = vector.broadcast %25 : vector<1x64xf32> to vector<8x64xf32>
    %27 = arith.addf %24, %26 : vector<8x64xf32>
    %cst = arith.constant 0.00999999977 : f32
    %28 = vector.broadcast %cst : f32 to vector<8x64xf32>
    %29 = arith.mulf %28, %27 : vector<8x64xf32>
    %30 = arith.maximumf %27, %29 : vector<8x64xf32>
    %31 = vector.extract_strided_slice %1 {offsets = [1, 0], sizes = [1, 64], strides = [1, 1]} : vector<16x128xf32> to vector<1x64xf32>
    %32 = vector.extract_strided_slice %1 {offsets = [2, 0], sizes = [1, 64], strides = [1, 1]} : vector<16x128xf32> to vector<1x64xf32>
    %cst_3 = arith.constant dense<0.000000e+00> : vector<64xf32>
    %33 = vector.multi_reduction <add>, %30, %cst_3 [0] : vector<8x64xf32> to vector<64xf32>
    %34 = vector.shape_cast %33 : vector<64xf32> to vector<1x64xf32>
    %35 = arith.mulf %30, %30 : vector<8x64xf32>
    %cst_4 = arith.constant dense<0.000000e+00> : vector<64xf32>
    %36 = vector.multi_reduction <add>, %35, %cst_4 [0] : vector<8x64xf32> to vector<64xf32>
    %37 = vector.shape_cast %36 : vector<64xf32> to vector<1x64xf32>
    %cst_5 = arith.constant 1.250000e-01 : f32
    %38 = vector.broadcast %cst_5 : f32 to vector<1x64xf32>
    %39 = arith.mulf %34, %38 : vector<1x64xf32>
    %cst_6 = arith.constant 1.250000e-01 : f32
    %40 = vector.broadcast %cst_6 : f32 to vector<1x64xf32>
    %41 = arith.mulf %37, %40 : vector<1x64xf32>
    %42 = arith.mulf %39, %39 : vector<1x64xf32>
    %43 = arith.subf %41, %42 : vector<1x64xf32>
    %cst_7 = arith.constant 9.99999974E-6 : f32
    %44 = vector.broadcast %cst_7 : f32 to vector<1x64xf32>
    %45 = arith.addf %43, %44 : vector<1x64xf32>
    %46 = math.rsqrt %45 : vector<1x64xf32>
    %47 = arith.mulf %46, %31 : vector<1x64xf32>
    %48 = vector.broadcast %39 : vector<1x64xf32> to vector<8x64xf32>
    %49 = arith.subf %30, %48 : vector<8x64xf32>
    %50 = vector.broadcast %47 : vector<1x64xf32> to vector<8x64xf32>
    %51 = arith.mulf %49, %50 : vector<8x64xf32>
    %52 = vector.broadcast %32 : vector<1x64xf32> to vector<8x64xf32>
    %53 = arith.addf %51, %52 : vector<8x64xf32>
    %c16 = arith.constant 16 : index
    %c0_8 = arith.constant 0 : index
    %54 = vector.load %arg2[%c16, %c0_8] : memref<80x128xf32, #tpu.memory_space<vmem>>, vector<64x32xf32>
    %cst_9 = arith.constant dense<0.000000e+00> : vector<8x32xf32>
    %55 = tpu.matmul %53, %54, %cst_9 {dimension_numbers = #tpu.dot_dimension_numbers<[1], [0], [0], [1], [0, 0, 1, 1], [], []>} : vector<8x64xf32>, vector<64x32xf32>, vector<8x32xf32> -> vector<8x32xf32>
    %56 = vector.extract_strided_slice %1 {offsets = [3, 0], sizes = [1, 32], strides = [1, 1]} : vector<16x128xf32> to vector<1x32xf32>
    %57 = vector.broadcast %56 : vector<1x32xf32> to vector<8x32xf32>
    %58 = arith.addf %55, %57 : vector<8x32xf32>
    %cst_10 = arith.constant 0.00999999977 : f32
    %59 = vector.broadcast %cst_10 : f32 to vector<8x32xf32>
    %60 = arith.mulf %59, %58 : vector<8x32xf32>
    %61 = arith.maximumf %58, %60 : vector<8x32xf32>
    %62 = vector.extract_strided_slice %1 {offsets = [4, 0], sizes = [1, 32], strides = [1, 1]} : vector<16x128xf32> to vector<1x32xf32>
    %63 = vector.extract_strided_slice %1 {offsets = [5, 0], sizes = [1, 32], strides = [1, 1]} : vector<16x128xf32> to vector<1x32xf32>
    %cst_11 = arith.constant dense<0.000000e+00> : vector<32xf32>
    %64 = vector.multi_reduction <add>, %61, %cst_11 [0] : vector<8x32xf32> to vector<32xf32>
    %65 = vector.shape_cast %64 : vector<32xf32> to vector<1x32xf32>
    %66 = arith.mulf %61, %61 : vector<8x32xf32>
    %cst_12 = arith.constant dense<0.000000e+00> : vector<32xf32>
    %67 = vector.multi_reduction <add>, %66, %cst_12 [0] : vector<8x32xf32> to vector<32xf32>
    %68 = vector.shape_cast %67 : vector<32xf32> to vector<1x32xf32>
    %cst_13 = arith.constant 1.250000e-01 : f32
    %69 = vector.broadcast %cst_13 : f32 to vector<1x32xf32>
    %70 = arith.mulf %65, %69 : vector<1x32xf32>
    %cst_14 = arith.constant 1.250000e-01 : f32
    %71 = vector.broadcast %cst_14 : f32 to vector<1x32xf32>
    %72 = arith.mulf %68, %71 : vector<1x32xf32>
    %73 = arith.mulf %70, %70 : vector<1x32xf32>
    %74 = arith.subf %72, %73 : vector<1x32xf32>
    %cst_15 = arith.constant 9.99999974E-6 : f32
    %75 = vector.broadcast %cst_15 : f32 to vector<1x32xf32>
    %76 = arith.addf %74, %75 : vector<1x32xf32>
    %77 = math.rsqrt %76 : vector<1x32xf32>
    %78 = arith.mulf %77, %62 : vector<1x32xf32>
    %79 = vector.broadcast %70 : vector<1x32xf32> to vector<8x32xf32>
    %80 = arith.subf %61, %79 : vector<8x32xf32>
    %81 = vector.broadcast %78 : vector<1x32xf32> to vector<8x32xf32>
    %82 = arith.mulf %80, %81 : vector<8x32xf32>
    %83 = vector.broadcast %63 : vector<1x32xf32> to vector<8x32xf32>
    %84 = arith.addf %82, %83 : vector<8x32xf32>
    %85 = vector.extract_strided_slice %1 {offsets = [7, 0], sizes = [1, 32], strides = [1, 1]} : vector<16x128xf32> to vector<1x32xf32>
    %86 = vector.broadcast %85 : vector<1x32xf32> to vector<8x32xf32>
    %87 = arith.mulf %84, %86 : vector<8x32xf32>
    %cst_16 = arith.constant dense<0.000000e+00> : vector<8xf32>
    %88 = vector.multi_reduction <add>, %87, %cst_16 [1] : vector<8x32xf32> to vector<8xf32>
    %89 = vector.shape_cast %88 : vector<8xf32> to vector<8x1xf32>
    %90 = vector.extract_strided_slice %1 {offsets = [8, 0], sizes = [1, 32], strides = [1, 1]} : vector<16x128xf32> to vector<1x32xf32>
    %91 = vector.broadcast %90 : vector<1x32xf32> to vector<8x32xf32>
    %92 = arith.mulf %84, %91 : vector<8x32xf32>
    %cst_17 = arith.constant dense<0.000000e+00> : vector<8xf32>
    %93 = vector.multi_reduction <add>, %92, %cst_17 [1] : vector<8x32xf32> to vector<8xf32>
    %94 = vector.shape_cast %93 : vector<8xf32> to vector<8x1xf32>
    %95 = vector.extract_strided_slice %1 {offsets = [6, 0], sizes = [1, 1], strides = [1, 1]} : vector<16x128xf32> to vector<1x1xf32>
    %96 = vector.broadcast %95 : vector<1x1xf32> to vector<8x1xf32>
    %97 = arith.addf %89, %96 : vector<8x1xf32>
    %c0_18 = arith.constant 0 : index
    %c0_19 = arith.constant 0 : index
    %98 = vector.load %arg3[%c0_18, %c0_19] : memref<8x2xf32, #tpu.memory_space<vmem>>, vector<8x1xf32>
    tpu.vector_store %arg3[%c0_18, %c0_19], %97 {strides = array<i32>} : memref<8x2xf32, #tpu.memory_space<vmem>>, vector<8x1xf32>,
    %99 = vector.extract_strided_slice %1 {offsets = [6, 1], sizes = [1, 1], strides = [1, 1]} : vector<16x128xf32> to vector<1x1xf32>
    %100 = vector.broadcast %99 : vector<1x1xf32> to vector<8x1xf32>
    %101 = arith.addf %94, %100 : vector<8x1xf32>
    %c0_20 = arith.constant 0 : index
    %c1 = arith.constant 1 : index
    %102 = vector.load %arg3[%c0_20, %c1] : memref<8x2xf32, #tpu.memory_space<vmem>>, vector<8x1xf32>
    tpu.vector_store %arg3[%c0_20, %c1], %101 {strides = array<i32>} : memref<8x2xf32, #tpu.memory_space<vmem>>, vector<8x1xf32>,
    return
  }
  func.func @transform_0(%arg0: i32) -> (i32, i32) {
    %c0_i32 = arith.constant 0 : i32
    %c0_i32_0 = arith.constant 0 : i32
    return %arg0, %c0_i32 : i32, i32
  }
  func.func @transform_1(%arg0: i32) -> (i32, i32) {
    %c0_i32 = arith.constant 0 : i32
    %c0_i32_0 = arith.constant 0 : i32
    %c0_i32_1 = arith.constant 0 : i32
    return %c0_i32, %c0_i32_0 : i32, i32
  }
  func.func @transform_2(%arg0: i32) -> (i32, i32) {
    %c0_i32 = arith.constant 0 : i32
    %c0_i32_0 = arith.constant 0 : i32
    return %arg0, %c0_i32 : i32, i32
  }
}

</mosaic_0001>

<llo_original>
// kernel: tpu_custom_call.1
$region0: #{tpu_custom_call.1}
  #allocation0 [shape = 'u32[]', space=smem, size = 0x4, offset = 0x4, fixed_abs, tag = 'smem constant byte address 0x4 - core index']
  #allocation1 [shape = 'u32[72,128]{1,0:T(1,128)}', space=vmem, size = 0x9000, scoped, tag = 'internal scratch']
  %s0 = inlined_call_operand.vmem [shape: f32[32,4], index: 0, kind: input, shape index: {}]
  %s1 = inlined_call_operand.hbm [shape: f32[80,128], index: 1, kind: input, shape index: {}]
  %s2 = inlined_call_operand.vmem [shape: f32[32,2], index: 2, kind: output, shape index: {}]
  %s3 = sld [smem:[#allocation0]]
  $region45: #{tpu_custom_call.1} parent=0
    _
  %s5 = ssub.s32 1, %s3
  %s6 = scalar_select 0, %s5, %s3
  $region1: #{tpu_custom_call.1} parent=0
    #allocation2 [shape = 'u8[40960]{0}', space=vmem, size = 0xa000, scoped, tag = 'input window, operand 1, single buffered']
    #allocation3 [shape = 's32[2]{0}', space=sflag, size = 0x8, scoped, tag = 'scoped memory for tpu_custom_call.1']
    %7 = vsyncpa [#allocation3], 0
    loop: start=0, step=1, limit=6
    $region2: #{tpu_custom_call.1} parent=1 // loop_pre_header
      _
    $region3: #{tpu_custom_call.1} parent=1 // loop_header
      %s9 = sphi 0, %s13
      %p10 = scmp.ge.s32.totalorder %s9, 6
      %s19 = sphi 0, %s21
      %s22 = sphi 0, %s19
      %s23 = sphi 0, %s22
      %s39 = sphi 0, %s23
      %s43 = sphi 0, %s43
      %s45 = sphi 0, %s43
      %s46 = sphi 0, %s45
      %s60 = sphi 0, %s46
      %s66 = sphi 0, %s68
      %s69 = sphi 0, %s66
      %s70 = sphi 0, %s69
      %s86 = sphi 0, %s70
    $region4: #{tpu_custom_call.1} parent=1 // loop_header_branch
      %12 = sbr.rel (%p10) target = $region8
    $region5: #{tpu_custom_call.1} parent=1 // loop_body
      %s14 = ssub.s32 %s9, 1
      %s15 = ssub.s32 %s9, 2
      %s16 = sadd.s32 %s9, 1
      %s17 = ssub.s32 %s9, %s16
      %p18 = scmp.eq.s32.totalorder %s17, 0
      %s20 = sadd.s32 %s19, 1
      %s21 = scalar_select %p18, %s19, %s20
      %p24 = pneg %p18
      %p25 = scmp.eq.s32.totalorder %s9, 3
      %p26 = por %p24, %p25
      %p27 = scmp.ne.s32.totalorder %s19, %s22
      %p28 = scmp.eq.s32.totalorder %s9, 0
      %p29 = por %p27, %p28
      %p30 = scmp.ne.s32.totalorder %s19, %s22
      %p31 = scmp.eq.s32.totalorder %s14, 3
      %p32 = por %p30, %p31
      %p33 = scmp.ne.s32.totalorder %s22, %s23
      %p34 = scmp.eq.s32.totalorder %s14, 0
      %p35 = por %p33, %p34
      %p36 = scmp.ne.s32.totalorder %s22, %s23
      %p37 = scmp.eq.s32.totalorder %s15, 3
      %p38 = por %p36, %p37
      %p40 = scmp.ne.s32.totalorder %s23, %s39
      %p41 = scmp.eq.s32.totalorder %s15, 0
      %p42 = por %p40, %p41
      %s44 = sadd.s32 %s43, 1
      %p47 = scmp.eq.s32.totalorder %s9, 3
      %p48 = scmp.ne.s32.totalorder %s43, %s45
      %p49 = scmp.eq.s32.totalorder %s9, 0
      %p50 = por %p48, %p49
      %p51 = scmp.ne.s32.totalorder %s43, %s45
      %p52 = scmp.eq.s32.totalorder %s14, 3
      %p53 = por %p51, %p52
      %p54 = scmp.ne.s32.totalorder %s45, %s46
      %p55 = scmp.eq.s32.totalorder %s14, 0
      %p56 = por %p54, %p55
      %p57 = scmp.ne.s32.totalorder %s45, %s46
      %p58 = scmp.eq.s32.totalorder %s15, 3
      %p59 = por %p57, %p58
      %p61 = scmp.ne.s32.totalorder %s46, %s60
      %p62 = scmp.eq.s32.totalorder %s15, 0
      %p63 = por %p61, %p62
      %s64 = ssub.s32 %s9, %s16
      %p65 = scmp.eq.s32.totalorder %s64, 0
      %s67 = sadd.s32 %s66, 1
      %s68 = scalar_select %p65, %s66, %s67
      %p71 = pneg %p65
      %p72 = scmp.eq.s32.totalorder %s9, 3
      %p73 = por %p71, %p72
      %p74 = scmp.ne.s32.totalorder %s66, %s69
      %p75 = scmp.eq.s32.totalorder %s9, 0
      %p76 = por %p74, %p75
      %p77 = scmp.ne.s32.totalorder %s66, %s69
      %p78 = scmp.eq.s32.totalorder %s14, 3
      %p79 = por %p77, %p78
      %p80 = scmp.ne.s32.totalorder %s69, %s70
      %p81 = scmp.eq.s32.totalorder %s14, 0
      %p82 = por %p80, %p81
      %p83 = scmp.ne.s32.totalorder %s69, %s70
      %p84 = scmp.eq.s32.totalorder %s15, 3
      %p85 = por %p83, %p84
      %p87 = scmp.ne.s32.totalorder %s70, %s86
      %p88 = scmp.eq.s32.totalorder %s15, 0
      %p89 = por %p87, %p88
      %p90 = scmp.le.s32.totalorder 1, %s9
      %p91 = scmp.lt.s32.totalorder %s9, 5
      %p92 = pnand %p90, %p91
      %p93 = pneg %p92
      // Predicated region
      $region9: #{tpu_custom_call.1} parent=5 // pred_check
        _
      $region10: #{tpu_custom_call.1} parent=5 // pred_check_branch
        %95 = sbr.rel (%p92) target = $region12
      $region11: #{tpu_custom_call.1} parent=5 // pred_region
        %s96 = ssub.s32 %s9, 1
        // Predicated region
        $region13: #{tpu_custom_call.1} parent=11 // pred_check
          %p97 = pneg %p56
        $region14: #{tpu_custom_call.1} parent=11 // pred_check_branch
          %99 = sbr.rel (%p97) target = $region16
        $region15: #{tpu_custom_call.1} parent=11 // pred_region
          %101 = vsyncadd [#allocation3], 0
          %s102 = sshll.u32 %s1, 4
          %s103 = int_to_ptr.hbm [resolvable:$true] %s102
          %s104 = sshll.u32 [#allocation2], 4
          %s105 = int_to_ptr.vmem [resolvable:$true] %s104
          %110 = dma.hbm_to_vmem [thread:$0]  %s103, 1280, %s105, [#allocation3], 128, 128, 8
        $region16: #{tpu_custom_call.1} parent=11 // pred_fallthru
          _
      $region12: #{tpu_custom_call.1} parent=5 // pred_fallthru
        _
      %p111 = scmp.lt.s32.totalorder %s9, 4
      // Predicated region
      $region17: #{tpu_custom_call.1} parent=5 // pred_check
        %p112 = pneg %p111
      $region18: #{tpu_custom_call.1} parent=5 // pred_check_branch
        %114 = sbr.rel (%p112) target = $region20
      $region19: #{tpu_custom_call.1} parent=5 // pred_region
        // Predicated region
        $region21: #{tpu_custom_call.1} parent=19 // pred_check
          %p115 = pneg %p29
        $region22: #{tpu_custom_call.1} parent=19 // pred_check_branch
          %117 = sbr.rel (%p115) target = $region24
        $region23: #{tpu_custom_call.1} parent=19 // pred_region
          %p118 = scmp.lt.s32.totalorder %s9, 3
          %s119 = scalar_select %p118, %s9, 3
          %s120 = smul.addr %s119, 8
          %s121 = scalar_lea.vmem %s0, %s120
        $region24: #{tpu_custom_call.1} parent=19 // pred_fallthru
          _
      $region20: #{tpu_custom_call.1} parent=5 // pred_fallthru
        _
      %p122 = scmp.le.s32.totalorder 1, %s9
      %p123 = scmp.lt.s32.totalorder %s9, 5
      %p124 = pnand %p122, %p123
      %p125 = pneg %p124
      // Predicated region
      $region25: #{tpu_custom_call.1} parent=5 // pred_check
        _
      $region26: #{tpu_custom_call.1} parent=5 // pred_check_branch
        %127 = sbr.rel (%p124) target = $region28
      $region27: #{tpu_custom_call.1} parent=5 // pred_region
        %s128 = ssub.s32 %s9, 1
        // Predicated region
        $region29: #{tpu_custom_call.1} parent=27 // pred_check
          %p129 = pneg %p56
        $region30: #{tpu_custom_call.1} parent=27 // pred_check_branch
          %131 = sbr.rel (%p129) target = $region32
        $region31: #{tpu_custom_call.1} parent=27 // pred_region
          %133 = dma.done [#allocation3], 1280
        $region32: #{tpu_custom_call.1} parent=27 // pred_fallthru
          _
        %p134 = scmp.lt.s32.totalorder %s14, 3
        %s135 = scalar_select %p134, %s14, 3
        %s136 = smul.addr %s135, 8
        %s137 = scalar_lea.vmem %s0, %s136
        %p138 = pneg %p35
        %p139 = pneg %p32
        %p140 = pneg %p56
        %p141 = pneg %p53
        %p142 = pneg %p82
        %p143 = pneg %p79
        %p144 = scmp.lt.s32.totalorder %s14, 3
        %s145 = scalar_select %p144, %s14, 3
        %s146 = smul.addr %s145, 8
        %s147 = scalar_lea.vmem %s2, %s146
        %p148 = scmp.lt.s32.totalorder %s14, 3
        %s149 = scalar_select %p148, %s14, 3
        %s150 = smul.addr %s149, 8
        %s151 = scalar_lea.vmem %s0, %s150
        %p152 = scmp.lt.s32.totalorder %s14, 3
        %s153 = scalar_select %p152, %s14, 3
        %s154 = smul.addr %s153, 8
        %s155 = scalar_lea.vmem %s2, %s154
        %v156 = vld [vmem:[%s151] sm:$0xff]
        %v157 = vld [vmem:[#allocation2] sm:$0xff]
        %v158 = vld [vmem:[#allocation2 + $0x8] sm:$0xff]
        %160 = vset.pattern.permute.xlu0 0
        %161 = vperm.xlu0 %160, %v156
        %v162 = vpop.permute.xlu0 %161
        %v164 = vperm.slane %v158, 1
        %v165 = vmul.f32 %v162, %v164
        %166 = vset.pattern.permute.xlu0 1
        %167 = vperm.xlu0 %166, %v156
        %v168 = vpop.permute.xlu0 %167
        %v170 = vperm.slane %v158, 2
        %v171 = vmul.f32 %v168, %v170
        %v172 = vadd.f32 %v165, %v171
        %173 = vset.pattern.permute.xlu0 2
        %174 = vperm.xlu0 %173, %v156
        %v175 = vpop.permute.xlu0 %174
        %v177 = vperm.slane %v158, 3
        %v178 = vmul.f32 %v175, %v177
        %v179 = vadd.f32 %v172, %v178
        %180 = vset.pattern.permute.xlu0 3
        %181 = vperm.xlu0 %180, %v156
        %v182 = vpop.permute.xlu0 %181
        %v184 = vperm.slane %v158, 4
        %v185 = vmul.f32 %v182, %v184
        %v186 = vadd.f32 %v179, %v185
        %v187 = vperm.slane %v157, 0
        %v188 = vadd.f32 %v186, %v187
        %v189 = vmul.f32 %v188, 0.01
        %v190 = vmax.f32 %v188, %v189
        %vm191 = vcmask 523264
        %v192 = vsel %vm191, %v190, 0.0
        %v193 = vrot.slane %v192, 4
        %v194 = vadd.f32 %v192, %v193
        %v195 = vrot.slane %v194, 2
        %v196 = vadd.f32 %v194, %v195
        %v197 = vrot.slane %v196, 1
        %v198 = vadd.f32 %v196, %v197
        %v199 = vmul.f32 %v190, %v190
        %v200 = vsel %vm191, %v199, 0.0
        %v201 = vrot.slane %v200, 4
        %v202 = vadd.f32 %v200, %v201
        %v203 = vrot.slane %v202, 2
        %v204 = vadd.f32 %v202, %v203
        %v205 = vrot.slane %v204, 1
        %v206 = vadd.f32 %v204, %v205
        %v207 = vmul.f32 %v198, 0.125
        %v208 = vmul.f32 %v206, 0.125
        %v209 = vmul.f32 %v207, %v207
        %v210 = vsub.f32 %v208, %v209
        %v211 = vadd.f32 %v210, 1e-05
        %v212 = vrsqrt.pop %v211
        %v213 = vmul.f32 %v212, %v211
        %v214 = vmul.f32 %v213, %v212
        %v215 = vmul.f32 0.5, %v214
        %v216 = vsub.f32 1.5, %v215
        %v217 = vmul.f32 %v212, %v216
        %vm218 = vweird.f32 %v211
        %vm219 = vweird.f32 %v212
        %vm220 = vmor %vm218, %vm219
        %v221 = vsel %vm220, %v212, %v217
        %v222 = vmul.f32 %v221, %v157
        %v223 = vsub.f32 %v190, %v207
        %v224 = vperm.slane %v222, 1
        %v225 = vmul.f32 %v223, %v224
        %v226 = vperm.slane %v157, 2
        %v227 = vadd.f32 %v225, %v226
        %v228 = vld [vmem:[#allocation2 + $0x10] sm:$0xff]
        %v229 = vld [vmem:[#allocation2 + $0x18] sm:$0xff]
        %v230 = vld [vmem:[#allocation2 + $0x20] sm:$0xff]
        %v231 = vld [vmem:[#allocation2 + $0x28] sm:$0xff]
        %v232 = vld [vmem:[#allocation2 + $0x30] sm:$0xff]
        %v233 = vld [vmem:[#allocation2 + $0x38] sm:$0xff]
        %v234 = vld [vmem:[#allocation2 + $0x40] sm:$0xff]
        %v235 = vld [vmem:[#allocation2 + $0x48] sm:$0xff]
        %v236 = vperm.slane %v157, 3
        %v238 = vsel %vm191, %v227, 0
        %240 = vmatpush.msra.mxu0 0.0
        %241 = vmatpush.msra.mxu0 0.0
        %242 = vmatpush.msra.mxu0 0.0
        %243 = vmatpush.msra.mxu0 0.0
        %244 = vmatpush.msra.mxu0 0.0
        %245 = vmatpush.msra.mxu0 0.0
        %246 = vmatpush.msra.mxu0 0.0
        %247 = vmatpush.msra.mxu0 0.0
        %248 = vmatpush.msra.mxu0 %v235
        %249 = vmatpush.msra.mxu0 %v234
        %250 = vmatpush.msra.mxu0 %v233
        %251 = vmatpush.msra.mxu0 %v232
        %252 = vmatpush.msra.mxu0 %v231
        %253 = vmatpush.msra.mxu0 %v230
        %254 = vmatpush.msra.mxu0 %v229
        %255 = vmatpush.msra.mxu0 %v228
        %256 = vmatmul.f32.gmra.mxu0 %v238
        %v257 = vpop.f32.mrf.mxu0
        %v258 = vadd.f32 %v236, %v257
        %259 = vdwg.mxu0
        %v260 = vmul.f32 %v258, 0.01
        %v261 = vmax.f32 %v258, %v260
        %vm262 = vcmask 261120
        %v263 = vsel %vm262, %v261, 0.0
        %v264 = vrot.slane %v263, 4
        %v265 = vadd.f32 %v263, %v264
        %v266 = vrot.slane %v265, 2
        %v267 = vadd.f32 %v265, %v266
        %v268 = vrot.slane %v267, 1
        %v269 = vadd.f32 %v267, %v268
        %v270 = vmul.f32 %v261, %v261
        %v271 = vsel %vm262, %v270, 0.0
        %v272 = vrot.slane %v271, 4
        %v273 = vadd.f32 %v271, %v272
        %v274 = vrot.slane %v273, 2
        %v275 = vadd.f32 %v273, %v274
        %v276 = vrot.slane %v275, 1
        %v277 = vadd.f32 %v275, %v276
        %v278 = vmul.f32 %v269, 0.125
        %v279 = vmul.f32 %v277, 0.125
        %v280 = vmul.f32 %v278, %v278
        %v281 = vsub.f32 %v279, %v280
        %v282 = vadd.f32 %v281, 1e-05
        %v283 = vrsqrt.pop %v282
        %v284 = vmul.f32 %v283, %v282
        %v285 = vmul.f32 %v284, %v283
        %v286 = vmul.f32 0.5, %v285
        %v287 = vsub.f32 1.5, %v286
        %v288 = vmul.f32 %v283, %v287
        %vm289 = vweird.f32 %v282
        %vm290 = vweird.f32 %v283
        %vm291 = vmor %vm289, %vm290
        %v292 = vsel %vm291, %v283, %v288
        %v293 = vmul.f32 %v292, %v157
        %v294 = vsub.f32 %v261, %v278
        %v295 = vperm.slane %v293, 4
        %v296 = vmul.f32 %v294, %v295
        %v297 = vperm.slane %v157, 5
        %v298 = vadd.f32 %v296, %v297
        %v299 = vperm.slane %v157, 7
        %v300 = vmul.f32 %v298, %v299
        %v301 = vsel %vm262, %v300, 0.0
        %302 = vadd.xlane.f32.xlu0 %v301
        %v303 = vpop.xlane.xlu0 %302
        %v304 = vperm.slane %v158, 0
        %v305 = vmul.f32 %v298, %v304
        %v306 = vsel %vm262, %v305, 0.0
        %307 = vadd.xlane.f32.xlu0 %v306
        %v308 = vpop.xlane.xlu0 %307
        %v309 = vperm.slane %v157, 6
        %v310 = vadd.f32 %v303, %v309
        %vm311 = vcmask 7168
        %312 = vst.msk [vmem:[%s155] sm:$0xff] %vm311, %v310
        %v313 = vadd.f32 %v308, %v309
        %vm314 = vcmask 15368
        %315 = vst.msk [vmem:[%s155] sm:$0xff] %vm314, %v313
        %p316 = scmp.lt.s32.totalorder %s14, 3
        %s317 = scalar_select %p316, %s14, 3
        %s318 = smul.addr %s317, 8
        %s319 = scalar_lea.vmem %s2, %s318
        // Predicated region
        $region33: #{tpu_custom_call.1} parent=27 // pred_check
          %p320 = pneg %p79
        $region34: #{tpu_custom_call.1} parent=27 // pred_check_branch
          %322 = sbr.rel (%p320) target = $region36
        $region35: #{tpu_custom_call.1} parent=27 // pred_region
          _
        $region36: #{tpu_custom_call.1} parent=27 // pred_fallthru
          _
      $region28: #{tpu_custom_call.1} parent=5 // pred_fallthru
        _
      %p323 = scmp.le.s32.totalorder 2, %s9
      // Predicated region
      $region37: #{tpu_custom_call.1} parent=5 // pred_check
        %p324 = pneg %p323
      $region38: #{tpu_custom_call.1} parent=5 // pred_check_branch
        %326 = sbr.rel (%p324) target = $region40
      $region39: #{tpu_custom_call.1} parent=5 // pred_region
        %s327 = ssub.s32 %s9, 2
        // Predicated region
        $region41: #{tpu_custom_call.1} parent=39 // pred_check
          %p328 = pneg %p85
        $region42: #{tpu_custom_call.1} parent=39 // pred_check_branch
          %330 = sbr.rel (%p328) target = $region44
        $region43: #{tpu_custom_call.1} parent=39 // pred_region
          %p331 = scmp.lt.s32.totalorder %s15, 3
          %s332 = scalar_select %p331, %s15, 3
          %s333 = smul.addr %s332, 8
          %s334 = scalar_lea.vmem %s2, %s333
        $region44: #{tpu_custom_call.1} parent=39 // pred_fallthru
          _
      $region40: #{tpu_custom_call.1} parent=5 // pred_fallthru
        _
    $region6: #{tpu_custom_call.1} parent=1 // loop_footer
      %s13 = sadd.s32 1, %s9
    $region7: #{tpu_custom_call.1} parent=1 // loop_footer_branch
      %8 = sbr.rel target = $region3
    $region8: #{tpu_custom_call.1} parent=1 // loop_exit
      _
    %335 = vsyncpa [#allocation3], 1
    %s336 = scalar_lea.sflag [#allocation3], 1
    %337 = vsyncpa %s336, 1

</llo_original>
